<compile_context>
chip_gen: v5e
topology: v5e:2x2
jax: 0.10.0
libtpu: 0.0.40
codegen_flags: <defaults>
</compile_context>

<pallas_src>
import functools

import jax
import jax.numpy as jnp
from jax.experimental import pallas as pl
from jax.experimental.pallas import tpu as pltpu

LN_EPS = 1e-5          # torch.nn.LayerNorm default
NEG_PAD = -1.0e30      # bias for padded label lanes (never wins argmax)
LANES = 128


def mlp_kernel(x_ref, w1_ref, b1_ref, gamma_ref, beta_ref, w2_ref, b2_ref,
               logits_ref, labels_ref):
    """Fused: Linear -> relu -> LayerNorm -> (Dropout=id) -> Linear -> argmax."""
    x = x_ref[...]                                              # (TB, D_in) bf16

    # Linear 1 (MXU, bf16 x bf16 -> f32 acc) + bias
    h = jnp.dot(x, w1_ref[...], preferred_element_type=jnp.float32)
    h = h + b1_ref[...]                                         # (TB, H) f32

    # relu
    h = jnp.maximum(h, 0.0)

    # LayerNorm over last axis (matches torch.nn.LayerNorm(H)), f32 math
    mean = jnp.mean(h, axis=-1, keepdims=True)
    centered = h - mean
    var = jnp.mean(centered * centered, axis=-1, keepdims=True)
    hn = centered * jax.lax.rsqrt(var + LN_EPS)
    hn = hn * gamma_ref[...] + beta_ref[...]

    # Dropout -> identity (eval / sampling)

    # Linear 2 (MXU) + bias -> lane-dense logits (padded lanes get NEG_PAD bias)
    logits = jnp.dot(hn.astype(w2_ref.dtype), w2_ref[...],
                     preferred_element_type=jnp.float32)
    logits = logits + b2_ref[...]                               # (TB, L_PAD) f32
    logits_ref[...] = logits

    # Fused argmax (first-occurrence tie-break, matches torch/jnp argmax).
    row_max = jnp.max(logits, axis=-1, keepdims=True)
    lane_ids = jax.lax.broadcasted_iota(jnp.int32, logits.shape, 1)
    sentinel = jnp.int32(logits.shape[-1])
    label = jnp.min(jnp.where(logits == row_max, lane_ids, sentinel),
                    axis=-1, keepdims=True)                     # (TB, 1) int32
    labels_ref[...] = jnp.broadcast_to(label, labels_ref.shape)


def _choose_batch_tile(batch):
    # Big enough to amortize the ~0.35 us per-step overhead, small enough that
    # double-buffered x/out blocks + resident weights fit v7x's 32 MiB scoped
    # VMEM (64 MiB physical).  For tiny demo batches, one block == the batch.
    return batch if batch <= 512 else 512


@functools.partial(jax.jit, static_argnames=())
def mlp_forward(x, w1, b1, gamma, beta, w2, b2):
    batch, d_in = x.shape
    hidden = w1.shape[1]
    num_labels = w2.shape[1]
    l_pad = pl.cdiv(num_labels, LANES) * LANES

    # Pad the output projection to a lane-dense (multiple-of-128) width.
    w2p = jnp.pad(w2, ((0, 0), (0, l_pad - num_labels)))
    b2p = jnp.pad(b2, ((0, 0), (0, l_pad - num_labels)),
                  mode="constant", constant_values=NEG_PAD)

    # bf16 matmul operands, f32 everything else (accumulation stays f32).
    xb = x.astype(jnp.bfloat16)
    w1b = w1.astype(jnp.bfloat16)
    w2b = w2p.astype(jnp.bfloat16)

    tb = _choose_batch_tile(batch)
    grid = (pl.cdiv(batch, tb),)

    const = lambda i: (0, 0)   # weights/bias/gamma/beta stay VMEM-resident
    bytes_accessed = (xb.size * 2 + w1b.size * 2 + w2b.size * 2
                      + (b1.size + gamma.size + beta.size + b2p.size) * 4
                      + batch * l_pad * 4 + batch * LANES * 4)
    cost = pl.CostEstimate(
        flops=2 * batch * (d_in * hidden + hidden * l_pad) + 10 * batch * hidden,
        transcendentals=batch,                   # rsqrt per row
        bytes_accessed=bytes_accessed)

    logits_pad, labels_pad = pl.pallas_call(
        mlp_kernel,
        grid=grid,
        out_shape=(
            jax.ShapeDtypeStruct((batch, l_pad), jnp.float32),
            jax.ShapeDtypeStruct((batch, LANES), jnp.int32),
        ),
        in_specs=[
            pl.BlockSpec((tb, d_in), lambda i: (i, 0)),    # x: tiled over batch
            pl.BlockSpec((d_in, hidden), const),           # w1 (resident)
            pl.BlockSpec((1, hidden), const),              # b1
            pl.BlockSpec((1, hidden), const),              # gamma
            pl.BlockSpec((1, hidden), const),              # beta
            pl.BlockSpec((hidden, l_pad), const),          # w2 (resident)
            pl.BlockSpec((1, l_pad), const),               # b2
        ],
        out_specs=(
            pl.BlockSpec((tb, l_pad), lambda i: (i, 0)),   # lane-dense logits
            pl.BlockSpec((tb, LANES), lambda i: (i, 0)),   # lane-dense labels
        ),
        compiler_params=pltpu.CompilerParams(
            dimension_semantics=("parallel",)),
        cost_estimate=cost,
    )(xb, w1b, b1, gamma, beta, w2b, b2p)

    # Glue: is_sampling=True branch of MLP.forward
    return {"output_probs": logits_pad[:, :num_labels],
            "output_label": labels_pad[:, 0]}


def init_params(key, d_in, hidden, num_labels):
    """Deterministic params, mimicking torch.nn.Linear's U(-1/sqrt(fan_in), ...)."""
    k1, k2, k3, k4 = jax.random.split(key, 4)
    lim1 = 1.0 / (d_in ** 0.5)
    lim2 = 1.0 / (hidden ** 0.5)
    w1 = jax.random.uniform(k1, (d_in, hidden), jnp.float32, -lim1, lim1)
    b1 = jax.random.uniform(k2, (1, hidden), jnp.float32, -lim1, lim1)
    gamma = jnp.ones((1, hidden), jnp.float32)   # LayerNorm weight
    beta = jnp.zeros((1, hidden), jnp.float32)   # LayerNorm bias
    w2 = jax.random.uniform(k3, (hidden, num_labels), jnp.float32, -lim2, lim2)
    b2 = jax.random.uniform(k4, (1, num_labels), jnp.float32, -lim2, lim2)
    return w1, b1, gamma, beta, w2, b2


def reference_forward(x, w1, b1, gamma, beta, w2, b2):
    """Plain-JAX reference using the same bf16 matmul operands / f32 accum."""
    h = jnp.dot(x.astype(jnp.bfloat16), w1.astype(jnp.bfloat16),
                preferred_element_type=jnp.float32) + b1
    h = jnp.maximum(h, 0.0)
    mean = jnp.mean(h, axis=-1, keepdims=True)
    var = jnp.mean((h - mean) ** 2, axis=-1, keepdims=True)
    hn = (h - mean) * jax.lax.rsqrt(var + LN_EPS) * gamma + beta
    logits = jnp.dot(hn.astype(jnp.bfloat16), w2.astype(jnp.bfloat16),
                     preferred_element_type=jnp.float32) + b2
    return logits


if __name__ == "__main__":
    batch, d_in, hidden, num_labels = 8, 32, 64, 8

    key = jax.random.PRNGKey(0)
    kx, kp = jax.random.split(key)
    x = jax.random.normal(kx, (batch, d_in), jnp.float32)
    params = init_params(kp, d_in, hidden, num_labels)

    out = mlp_forward(x, *params)
    out = jax.block_until_ready(out)

    # Sanity-check kernel vs. plain-JAX reference (same bf16 matmul path).
    ref = reference_forward(x, *params)
    assert out["output_probs"].shape == (batch, num_labels)
    assert jnp.allclose(out["output_probs"], ref, atol=1e-2, rtol=1e-2), \
        "Pallas kernel diverges from reference"
    # Fused argmax must agree exactly with argmax of the kernel's own logits.
    assert out["output_label"].shape == (batch,)
    assert jnp.array_equal(out["output_label"],
                           jnp.argmax(out["output_probs"], axis=1)), \
        "Fused argmax diverges from logits argmax"

    print("KERNEL_OK")
</pallas_src>

<mosaic_0001>
module attributes {stable_mosaic.version = 11 : i64} {
  func.func @mlp_kernel(%arg0: i32, %arg1: memref<8x32xbf16, #tpu.memory_space<vmem>>, %arg2: memref<32x64xbf16, #tpu.memory_space<vmem>>, %arg3: memref<1x64xf32, #tpu.memory_space<vmem>>, %arg4: memref<1x64xf32, #tpu.memory_space<vmem>>, %arg5: memref<1x64xf32, #tpu.memory_space<vmem>>, %arg6: memref<64x128xbf16, #tpu.memory_space<vmem>>, %arg7: memref<1x128xf32, #tpu.memory_space<vmem>>, %arg8: memref<8x128xf32, #tpu.memory_space<vmem>>, %arg9: memref<8x128xi32, #tpu.memory_space<vmem>>) attributes {dimension_semantics = [#tpu.dimension_semantics<parallel>], iteration_bounds = array<i64: 1>, scalar_prefetch = 0 : i64, scratch_operands = 0 : i64, tpu.core_type = #tpu.core_type<tc>, window_params = [{transform_indices = @transform_0, window_bounds = array<i64: 8, 32>}, {pipeline_mode = #tpu.pipeline_mode<synchronous>, transform_indices = @transform_1, window_bounds = array<i64: 32, 64>}, {pipeline_mode = #tpu.pipeline_mode<synchronous>, transform_indices = @transform_2, window_bounds = array<i64: 1, 64>}, {pipeline_mode = #tpu.pipeline_mode<synchronous>, transform_indices = @transform_3, window_bounds = array<i64: 1, 64>}, {pipeline_mode = #tpu.pipeline_mode<synchronous>, transform_indices = @transform_4, window_bounds = array<i64: 1, 64>}, {pipeline_mode = #tpu.pipeline_mode<synchronous>, transform_indices = @transform_5, window_bounds = array<i64: 64, 128>}, {pipeline_mode = #tpu.pipeline_mode<synchronous>, transform_indices = @transform_6, window_bounds = array<i64: 1, 128>}, {transform_indices = @transform_7, window_bounds = array<i64: 8, 128>}, {transform_indices = @transform_8, window_bounds = array<i64: 8, 128>}]} {
    %c0 = arith.constant 0 : index
    %c0_0 = arith.constant 0 : index
    %0 = vector.load %arg1[%c0, %c0_0] : memref<8x32xbf16, #tpu.memory_space<vmem>>, vector<8x32xbf16>
    %c0_1 = arith.constant 0 : index
    %c0_2 = arith.constant 0 : index
    %1 = vector.load %arg2[%c0_1, %c0_2] : memref<32x64xbf16, #tpu.memory_space<vmem>>, vector<32x64xbf16>
    %cst = arith.constant dense<0.000000e+00> : vector<8x64xf32>
    %2 = tpu.matmul %0, %1, %cst {dimension_numbers = #tpu.dot_dimension_numbers<[1], [0], [0], [1], [0, 0, 1, 1], [], []>} : vector<8x32xbf16>, vector<32x64xbf16>, vector<8x64xf32> -> vector<8x64xf32>
    %c0_3 = arith.constant 0 : index
    %c0_4 = arith.constant 0 : index
    %3 = vector.load %arg3[%c0_3, %c0_4] : memref<1x64xf32, #tpu.memory_space<vmem>>, vector<1x64xf32>
    %4 = vector.broadcast %3 : vector<1x64xf32> to vector<8x64xf32>
    %5 = arith.addf %2, %4 : vector<8x64xf32>
    %cst_5 = arith.constant 0.000000e+00 : f32
    %6 = vector.broadcast %cst_5 : f32 to vector<8x64xf32>
    %7 = arith.maximumf %5, %6 : vector<8x64xf32>
    %cst_6 = arith.constant dense<0.000000e+00> : vector<8xf32>
    %8 = vector.multi_reduction <add>, %7, %cst_6 [1] : vector<8x64xf32> to vector<8xf32>
    %9 = vector.shape_cast %8 : vector<8xf32> to vector<8x1xf32>
    %cst_7 = arith.constant 6.400000e+01 : f32
    %10 = vector.broadcast %cst_7 : f32 to vector<8x1xf32>
    %11 = arith.divf %9, %10 : vector<8x1xf32>
    %12 = vector.broadcast %11 : vector<8x1xf32> to vector<8x64xf32>
    %13 = arith.subf %7, %12 : vector<8x64xf32>
    %14 = arith.mulf %13, %13 : vector<8x64xf32>
    %cst_8 = arith.constant dense<0.000000e+00> : vector<8xf32>
    %15 = vector.multi_reduction <add>, %14, %cst_8 [1] : vector<8x64xf32> to vector<8xf32>
    %16 = vector.shape_cast %15 : vector<8xf32> to vector<8x1xf32>
    %cst_9 = arith.constant 6.400000e+01 : f32
    %17 = vector.broadcast %cst_9 : f32 to vector<8x1xf32>
    %18 = arith.divf %16, %17 : vector<8x1xf32>
    %cst_10 = arith.constant 9.99999974E-6 : f32
    %19 = vector.broadcast %cst_10 : f32 to vector<8x1xf32>
    %20 = arith.addf %18, %19 : vector<8x1xf32>
    %21 = math.rsqrt %20 : vector<8x1xf32>
    %22 = vector.broadcast %21 : vector<8x1xf32> to vector<8x64xf32>
    %23 = arith.mulf %13, %22 : vector<8x64xf32>
    %c0_11 = arith.constant 0 : index
    %c0_12 = arith.constant 0 : index
    %24 = vector.load %arg4[%c0_11, %c0_12] : memref<1x64xf32, #tpu.memory_space<vmem>>, vector<1x64xf32>
    %25 = vector.broadcast %24 : vector<1x64xf32> to vector<8x64xf32>
    %26 = arith.mulf %23, %25 : vector<8x64xf32>
    %c0_13 = arith.constant 0 : index
    %c0_14 = arith.constant 0 : index
    %27 = vector.load %arg5[%c0_13, %c0_14] : memref<1x64xf32, #tpu.memory_space<vmem>>, vector<1x64xf32>
    %28 = vector.broadcast %27 : vector<1x64xf32> to vector<8x64xf32>
    %29 = arith.addf %26, %28 : vector<8x64xf32>
    %30 = arith.truncf %29 : vector<8x64xf32> to vector<8x64xbf16>
    %c0_15 = arith.constant 0 : index
    %c0_16 = arith.constant 0 : index
    %31 = vector.load %arg6[%c0_15, %c0_16] : memref<64x128xbf16, #tpu.memory_space<vmem>>, vector<64x128xbf16>
    %cst_17 = arith.constant dense<0.000000e+00> : vector<8x128xf32>
    %32 = tpu.matmul %30, %31, %cst_17 {dimension_numbers = #tpu.dot_dimension_numbers<[1], [0], [0], [1], [0, 0, 1, 1], [], []>} : vector<8x64xbf16>, vector<64x128xbf16>, vector<8x128xf32> -> vector<8x128xf32>
    %c0_18 = arith.constant 0 : index
    %c0_19 = arith.constant 0 : index
    %33 = vector.load %arg7[%c0_18, %c0_19] : memref<1x128xf32, #tpu.memory_space<vmem>>, vector<1x128xf32>
    %34 = vector.broadcast %33 : vector<1x128xf32> to vector<8x128xf32>
    %35 = arith.addf %32, %34 : vector<8x128xf32>
    %c0_20 = arith.constant 0 : index
    %c0_21 = arith.constant 0 : index
    %36 = vector.load %arg8[%c0_20, %c0_21] : memref<8x128xf32, #tpu.memory_space<vmem>>, vector<8x128xf32>
    tpu.vector_store %arg8[%c0_20, %c0_21], %35 {strides = array<i32>} : memref<8x128xf32, #tpu.memory_space<vmem>>, vector<8x128xf32>,
    %cst_22 = arith.constant dense<0xFF800000> : vector<8xf32>
    %37 = vector.multi_reduction <maximumf>, %35, %cst_22 [1] : vector<8x128xf32> to vector<8xf32>
    %38 = vector.shape_cast %37 : vector<8xf32> to vector<8x1xf32>
    %39 = tpu.iota {dimensions = array<i32: 1>} : vector<8x128xi32>
    %40 = vector.broadcast %38 : vector<8x1xf32> to vector<8x128xf32>
    %41 = arith.cmpf oeq, %35, %40 : vector<8x128xf32>
    %c128_i32 = arith.constant 128 : i32
    %42 = vector.broadcast %c128_i32 : i32 to vector<8x128xi32>
    %43 = arith.select %41, %39, %42 : vector<8x128xi1>, vector<8x128xi32>
    %cst_23 = arith.constant dense<2147483647> : vector<8xi32>
    %44 = vector.multi_reduction <minsi>, %43, %cst_23 [1] : vector<8x128xi32> to vector<8xi32>
    %45 = vector.shape_cast %44 : vector<8xi32> to vector<8x1xi32>
    %46 = vector.shape_cast %45 : vector<8x1xi32> to vector<8x1xi32>
    %47 = vector.broadcast %46 : vector<8x1xi32> to vector<8x128xi32>
    %c0_24 = arith.constant 0 : index
    %c0_25 = arith.constant 0 : index
    %48 = vector.load %arg9[%c0_24, %c0_25] : memref<8x128xi32, #tpu.memory_space<vmem>>, vector<8x128xi32>
    tpu.vector_store %arg9[%c0_24, %c0_25], %47 {strides = array<i32>} : memref<8x128xi32, #tpu.memory_space<vmem>>, vector<8x128xi32>,
    return
  }
  func.func @transform_0(%arg0: i32) -> (i32, i32) {
    %c0_i32 = arith.constant 0 : i32
    %c0_i32_0 = arith.constant 0 : i32
    return %arg0, %c0_i32 : i32, i32
  }
  func.func @transform_1(%arg0: i32) -> (i32, i32) {
    %c0_i32 = arith.constant 0 : i32
    %c0_i32_0 = arith.constant 0 : i32
    %c0_i32_1 = arith.constant 0 : i32
    return %c0_i32, %c0_i32_0 : i32, i32
  }
  func.func @transform_2(%arg0: i32) -> (i32, i32) {
    %c0_i32 = arith.constant 0 : i32
    %c0_i32_0 = arith.constant 0 : i32
    %c0_i32_1 = arith.constant 0 : i32
    return %c0_i32, %c0_i32_0 : i32, i32
  }
  func.func @transform_3(%arg0: i32) -> (i32, i32) {
    %c0_i32 = arith.constant 0 : i32
    %c0_i32_0 = arith.constant 0 : i32
    %c0_i32_1 = arith.constant 0 : i32
    return %c0_i32, %c0_i32_0 : i32, i32
  }
  func.func @transform_4(%arg0: i32) -> (i32, i32) {
    %c0_i32 = arith.constant 0 : i32
    %c0_i32_0 = arith.constant 0 : i32
    %c0_i32_1 = arith.constant 0 : i32
    return %c0_i32, %c0_i32_0 : i32, i32
  }
  func.func @transform_5(%arg0: i32) -> (i32, i32) {
    %c0_i32 = arith.constant 0 : i32
    %c0_i32_0 = arith.constant 0 : i32
    %c0_i32_1 = arith.constant 0 : i32
    return %c0_i32, %c0_i32_0 : i32, i32
  }
  func.func @transform_6(%arg0: i32) -> (i32, i32) {
    %c0_i32 = arith.constant 0 : i32
    %c0_i32_0 = arith.constant 0 : i32
    %c0_i32_1 = arith.constant 0 : i32
    return %c0_i32, %c0_i32_0 : i32, i32
  }
  func.func @transform_7(%arg0: i32) -> (i32, i32) {
    %c0_i32 = arith.constant 0 : i32
    %c0_i32_0 = arith.constant 0 : i32
    return %arg0, %c0_i32 : i32, i32
  }
  func.func @transform_8(%arg0: i32) -> (i32, i32) {
    %c0_i32 = arith.constant 0 : i32
    %c0_i32_0 = arith.constant 0 : i32
    return %arg0, %c0_i32 : i32, i32
  }
}

</mosaic_0001>

<llo_original>
// kernel: mlp_forward.1
$region0: #{mlp_forward.1}
  #allocation0 [shape = 'u32[]', space=smem, size = 0x4, offset = 0x4, fixed_abs, tag = 'smem constant byte address 0x4 - core index']
  #allocation1 [shape = 'u32[72,128]{1,0:T(1,128)}', space=vmem, size = 0x9000, scoped, tag = 'internal scratch']
  %s0 = inlined_call_operand.vmem [shape: bf16[8,32], index: 0, kind: input, shape index: {}]
  %s1 = inlined_call_operand.vmem [shape: bf16[32,64], index: 1, kind: input, shape index: {}]
  %s2 = inlined_call_operand.vmem [shape: f32[1,64], index: 2, kind: input, shape index: {}]
  %s3 = inlined_call_operand.vmem [shape: f32[1,64], index: 3, kind: input, shape index: {}]
  %s4 = inlined_call_operand.vmem [shape: f32[1,64], index: 4, kind: input, shape index: {}]
  %s5 = inlined_call_operand.vmem [shape: bf16[64,128], index: 5, kind: input, shape index: {}]
  %s6 = inlined_call_operand.vmem [shape: f32[1,128], index: 6, kind: input, shape index: {}]
  %s7 = inlined_call_operand.hbm [shape: f32[8,128], index: 7, kind: output, shape index: {0}]
  %s8 = inlined_call_operand.vmem [shape: s32[8,128], index: 8, kind: output, shape index: {1}]
  %9 = xla_tuple %s7, %s8
  %s10 = sld [smem:[#allocation0]]
  $region46: #{mlp_forward.1} parent=0
    _
  %s12 = ssub.s32 1, %s10
  %s13 = scalar_select 0, %s12, %s10
  $region1: #{mlp_forward.1} parent=0
    #allocation2 [shape = 'u8[4096]{0}', space=vmem, size = 0x1000, scoped, tag = 'output window, operand 0, single buffered']
    #allocation3 [shape = 's32[1]{0}', space=sflag, size = 0x4, scoped, tag = 'scoped memory for mlp_forward.1']
    %14 = vsyncpa [#allocation3], 0
    // Predicated region
    $region2: #{mlp_forward.1} parent=1 // pred_check
      _
    $region3: #{mlp_forward.1} parent=1 // pred_check_branch
      %16 = sbr.rel (0) target = $region5
    $region4: #{mlp_forward.1} parent=1 // pred_region
      _
    $region5: #{mlp_forward.1} parent=1 // pred_fallthru
      _
    // Predicated region
    $region6: #{mlp_forward.1} parent=1 // pred_check
      _
    $region7: #{mlp_forward.1} parent=1 // pred_check_branch
      %18 = sbr.rel (0) target = $region9
    $region8: #{mlp_forward.1} parent=1 // pred_region
      _
    $region9: #{mlp_forward.1} parent=1 // pred_fallthru
      _
    // Predicated region
    $region10: #{mlp_forward.1} parent=1 // pred_check
      _
    $region11: #{mlp_forward.1} parent=1 // pred_check_branch
      %20 = sbr.rel (0) target = $region13
    $region12: #{mlp_forward.1} parent=1 // pred_region
      _
    $region13: #{mlp_forward.1} parent=1 // pred_fallthru
      _
    // Predicated region
    $region14: #{mlp_forward.1} parent=1 // pred_check
      _
    $region15: #{mlp_forward.1} parent=1 // pred_check_branch
      %22 = sbr.rel (0) target = $region17
    $region16: #{mlp_forward.1} parent=1 // pred_region
      _
    $region17: #{mlp_forward.1} parent=1 // pred_fallthru
      _
    // Predicated region
    $region18: #{mlp_forward.1} parent=1 // pred_check
      _
    $region19: #{mlp_forward.1} parent=1 // pred_check_branch
      %24 = sbr.rel (0) target = $region21
    $region20: #{mlp_forward.1} parent=1 // pred_region
      _
    $region21: #{mlp_forward.1} parent=1 // pred_fallthru
      _
    // Predicated region
    $region22: #{mlp_forward.1} parent=1 // pred_check
      _
    $region23: #{mlp_forward.1} parent=1 // pred_check_branch
      %26 = sbr.rel (0) target = $region25
    $region24: #{mlp_forward.1} parent=1 // pred_region
      _
    $region25: #{mlp_forward.1} parent=1 // pred_fallthru
      _
    // Predicated region
    $region26: #{mlp_forward.1} parent=1 // pred_check
      _
    $region27: #{mlp_forward.1} parent=1 // pred_check_branch
      %28 = sbr.rel (0) target = $region29
    $region28: #{mlp_forward.1} parent=1 // pred_region
      _
    $region29: #{mlp_forward.1} parent=1 // pred_fallthru
      _
    %v30 = vld [vmem:[%s0] sm:$0xf]
    %v31 = vld [vmem:[%s1] sm:$0xf]
    %v32 = vld [vmem:[%s1 + $0x4] sm:$0xf]
    %v33 = vld [vmem:[%s1 + $0x8] sm:$0xf]
    %v34 = vld [vmem:[%s1 + $0xc] sm:$0xf]
    %v35 = vld [vmem:[%s2] sm:$0x1]
    %v37 = vperm.slane %v35, 0
    %v43 = vunpack.c.l.b16 %v31
    %v44 = vunpack.c.l.b16 %v32
    %v45 = vunpack.c.l.b16 %v33
    %v46 = vunpack.c.l.b16 %v34
    %v47 = vpack.c.b16 %v44, %v43
    %v48 = vpack.c.b16 %v46, %v45
    %vm51 = vcmask 261120
    %v53 = vsel %vm51, %v30, 0
    %55 = vmatpush.bf16.msra.mxu0 0
    %56 = vmatpush.bf16.msra.mxu0 0
    %57 = vmatpush.bf16.msra.mxu0 0
    %58 = vmatpush.bf16.msra.mxu0 0
    %59 = vmatpush.bf16.msra.mxu0 0
    %60 = vmatpush.bf16.msra.mxu0 0
    %61 = vmatpush.bf16.msra.mxu0 %v48
    %62 = vmatpush.bf16.msra.mxu0 %v47
    %63 = vmatmul.bf16.gmra.mxu0 %v53
    %v64 = vpop.f32.mrf.mxu0
    %v65 = vadd.f32 %v37, %v64
    %v66 = vpop.f32.mrf.mxu0
    %67 = vdwg.mxu0
    %v68 = vmax.f32 %v65, 0.0
    %vm69 = vcmask 523264
    %v70 = vsel %vm69, %v68, 0.0
    %71 = vadd.xlane.f32.xlu0 %v70
    %v72 = vpop.xlane.xlu0 %71
    %v73 = vrcp.pop 64.0
    %v74 = vmul.f32 64.0, %v73
    %v75 = vsub.f32 1.0, %v74
    %v76 = vmul.f32 %v73, %v75
    %v77 = vadd.f32 %v73, %v76
    %vm78 = vweird.f32 %v73
    %v79 = vsel %vm78, %v73, %v77
    %v80 = vmul.f32 %v72, %v79
    %v81 = vsub.f32 %v68, %v80
    %v82 = vmul.f32 %v81, %v81
    %v83 = vsel %vm69, %v82, 0.0
    %84 = vadd.xlane.f32.xlu0 %v83
    %v85 = vpop.xlane.xlu0 %84
    %v86 = vmul.f32 %v85, %v79
    %v87 = vadd.f32 %v86, 1e-05
    %v88 = vrsqrt.pop %v87
    %v89 = vmul.f32 %v88, %v87
    %v90 = vmul.f32 %v89, %v88
    %v91 = vmul.f32 0.5, %v90
    %v92 = vsub.f32 1.5, %v91
    %v93 = vmul.f32 %v88, %v92
    %vm94 = vweird.f32 %v87
    %vm95 = vweird.f32 %v88
    %vm96 = vmor %vm94, %vm95
    %v97 = vsel %vm96, %v88, %v93
    %v98 = vmul.f32 %v81, %v97
    %v99 = vld [vmem:[%s3] sm:$0x1]
    %v101 = vperm.slane %v99, 0
    %v103 = vmul.f32 %v98, %v101
    %v104 = vld [vmem:[%s4] sm:$0x1]
    %v106 = vperm.slane %v104, 0
    %v108 = vadd.f32 %v103, %v106
    %v109 = vpack.c.bf16 %v108, %v108
    %v110 = vld [vmem:[%s5] sm:$0xf]
    %v111 = vld [vmem:[%s5 + $0x4] sm:$0xf]
    %v112 = vld [vmem:[%s5 + $0x8] sm:$0xf]
    %v113 = vld [vmem:[%s5 + $0xc] sm:$0xf]
    %v114 = vld [vmem:[%s5 + $0x10] sm:$0xf]
    %v115 = vld [vmem:[%s5 + $0x14] sm:$0xf]
    %v116 = vld [vmem:[%s5 + $0x18] sm:$0xf]
    %v117 = vld [vmem:[%s5 + $0x1c] sm:$0xf]
    %v118 = vld [vmem:[%s6] sm:$0x1]
    %v120 = vperm.slane %v118, 0
    %v130 = vunpack.c.l.b16 %v110
    %v131 = vunpack.c.l.b16 %v111
    %v132 = vunpack.c.l.b16 %v112
    %v133 = vunpack.c.l.b16 %v113
    %v134 = vunpack.c.l.b16 %v114
    %v135 = vunpack.c.l.b16 %v115
    %v136 = vunpack.c.l.b16 %v116
    %v137 = vunpack.c.l.b16 %v117
    %v138 = vpack.c.b16 %v131, %v130
    %v139 = vpack.c.b16 %v133, %v132
    %v140 = vpack.c.b16 %v135, %v134
    %v141 = vpack.c.b16 %v137, %v136
    %v147 = vsel %vm69, %v109, 0
    %149 = vmatpush.bf16.msra.mxu0 0
    %150 = vmatpush.bf16.msra.mxu0 0
    %151 = vmatpush.bf16.msra.mxu0 0
    %152 = vmatpush.bf16.msra.mxu0 0
    %153 = vmatpush.bf16.msra.mxu0 %v141
    %154 = vmatpush.bf16.msra.mxu0 %v140
    %155 = vmatpush.bf16.msra.mxu0 %v139
    %156 = vmatpush.bf16.msra.mxu0 %v138
    %157 = vmatmul.bf16.gmra.mxu0 %v147
    %v158 = vpop.f32.mrf.mxu0
    %v159 = vadd.f32 %v120, %v158
    %v160 = vpop.f32.mrf.mxu0
    %161 = vdwg.mxu0
    %162 = vst [vmem:[#allocation2] sm:$0xff] %v159
    %163 = vmax.xlane.f32.xlu0 %v159
    %v164 = vpop.xlane.xlu0 %163
    %v165 = vlaneseq
    %v166 = vand.u32 %v165, 127
    %vm167 = vcmp.eq.f32.partialorder %v159, %v164
    %v168 = vsel %vm167, %v166, 128
    %v169 = vand.u32 %v168, 65535
    %v170 = vshra.s32 %v168, 16
    %v171 = vcvt.s32.f32 %v169
    %v172 = vcvt.s32.f32 %v170
    %173 = vmin.xlane.f32.xlu0 %v172
    %v174 = vpop.xlane.xlu0 %173
    %vm175 = vcmp.eq.f32.partialorder %v172, %v174
    %v176 = vsel %vm175, %v171, inf
    %177 = vmin.xlane.f32.xlu0 %v176
    %v178 = vpop.xlane.xlu0 %177
    %v179 = vcvt.f32.s32 %v178
    %v180 = vcvt.f32.s32 %v174
    %v181 = vshll.u32 %v180, 16
    %v182 = vadd.s32 %v181, %v179
    %183 = vst [vmem:[%s8] sm:$0xff] %v182
    // Predicated region
    $region30: #{mlp_forward.1} parent=1 // pred_check
      _
    $region31: #{mlp_forward.1} parent=1 // pred_check_branch
      %185 = sbr.rel (0) target = $region33
    $region32: #{mlp_forward.1} parent=1 // pred_region
      %187 = vsyncadd [#allocation3], 0
      %s189 = sshll.u32 [#allocation2], 4
      %s190 = int_to_ptr.vmem [resolvable:$true] %s189
      %s191 = sshll.u32 %s7, 4
      %s192 = int_to_ptr.hbm [resolvable:$true] %s191
      %194 = dma.vmem_to_hbm [thread:$0]  %s190, 128, %s192, [#allocation3]
    $region33: #{mlp_forward.1} parent=1 // pred_fallthru
      _
    // Predicated region
    $region34: #{mlp_forward.1} parent=1 // pred_check
      _
    $region35: #{mlp_forward.1} parent=1 // pred_check_branch
      %196 = sbr.rel (0) target = $region37
    $region36: #{mlp_forward.1} parent=1 // pred_region
      _
    $region37: #{mlp_forward.1} parent=1 // pred_fallthru
      _
    // Predicated region
    $region38: #{mlp_forward.1} parent=1 // pred_check
      _
    $region39: #{mlp_forward.1} parent=1 // pred_check_branch
      %198 = sbr.rel (0) target = $region41
    $region40: #{mlp_forward.1} parent=1 // pred_region
      %200 = dma.done [#allocation3], 128
    $region41: #{mlp_forward.1} parent=1 // pred_fallthru
      _
    // Predicated region
    $region42: #{mlp_forward.1} parent=1 // pred_check
      _
    $region43: #{mlp_forward.1} parent=1 // pred_check_branch
      %202 = sbr.rel (0) target = $region45
    $region44: #{mlp_forward.1} parent=1 // pred_region
      _
    $region45: #{mlp_forward.1} parent=1 // pred_fallthru
      _
    %203 = vsyncpa [#allocation3], 1

</llo_original>
